<compile_context>
chip_gen: v6e
topology: v6e:2x2x1
jax: 0.10.0
libtpu: 0.0.40
codegen_flags: <defaults>
</compile_context>

<pallas_src>
import jax
import jax.numpy as jnp
from jax import lax
from jax.experimental import pallas as pl
from jax.experimental.pallas import tpu as pltpu

BN_EPS = 1e-5
LANE = 128


def _round_up(x, m):
    return (x + m - 1) // m * m


# ----------------------------------------------------------------------------
# Kernel 1: fused 3x3 conv (single K=9*Cin bf16 matmul on the MXU) + per-tile
# BatchNorm partial statistics (sum, sum-of-squares).
# One grid step == one (batch, output-row) pair.
# ----------------------------------------------------------------------------
def _conv_body(taps, w_ref, out_ref, stats_ref):
    lhs = jnp.concatenate(taps, axis=-1)                      # (Wo, 9*Cin) bf16
    acc = jnp.dot(lhs, w_ref[...],
                  preferred_element_type=jnp.float32)         # (Wo, Cp) f32
    out_ref[0, 0] = acc
    stats_ref[0, 0, 0:1, :] = jnp.sum(acc, axis=0, keepdims=True)
    stats_ref[0, 0, 1:2, :] = jnp.sum(acc * acc, axis=0, keepdims=True)


def _make_conv_kernel_s1(wo):
    # stride 1: three padded input rows (ho+0, ho+1, ho+2), contiguous slices
    def kernel(r0_ref, r1_ref, r2_ref, w_ref, out_ref, stats_ref):
        rows = (r0_ref, r1_ref, r2_ref)
        taps = [rows[kh][0, 0, kw:kw + wo, :]
                for kh in range(3) for kw in range(3)]
        _conv_body(taps, w_ref, out_ref, stats_ref)
    return kernel


def _make_conv_kernel_s2(wo):
    # stride 2: wrapper pre-split the padded W axis into even/odd column
    # phases, so every tap is still a contiguous static slice.
    def kernel(e0_ref, e1_ref, e2_ref, o0_ref, o1_ref, o2_ref,
               w_ref, out_ref, stats_ref):
        ev = (e0_ref, e1_ref, e2_ref)
        od = (o0_ref, o1_ref, o2_ref)
        taps = []
        for kh in range(3):
            taps.append(ev[kh][0, 0, 0:wo, :])        # kw = 0 -> even cols
            taps.append(od[kh][0, 0, 0:wo, :])        # kw = 1 -> odd  cols
            taps.append(ev[kh][0, 0, 1:wo + 1, :])    # kw = 2 -> even cols + 1
        _conv_body(taps, w_ref, out_ref, stats_ref)
    return kernel


# ----------------------------------------------------------------------------
# Kernel 2: apply folded BatchNorm (y*scale + shift) + ReLU, tiled the same way
# ----------------------------------------------------------------------------
def _bn_relu_kernel(y_ref, scale_ref, shift_ref, out_ref):
    y = y_ref[0, 0]                                           # (Wo, Cp) f32
    out_ref[0, 0] = jnp.maximum(y * scale_ref[...] + shift_ref[...], 0.0)


# ----------------------------------------------------------------------------
# Fused conv3x3 + BatchNorm(train) + ReLU wrapper (NHWC)
# ----------------------------------------------------------------------------
def conv_bn_relu(x, w, gamma, beta, stride):
    """x: (N,H,W,Cin) f32 NHWC ; w: (3,3,Cin,Cout). Returns (N,Ho,Wo,Cout) f32."""
    assert stride in (1, 2), "only stride 1 / 2 are supported"
    N, H, W, Cin = x.shape
    Cout = w.shape[-1]
    Ho = (H + 2 - 3) // stride + 1
    Wo = (W + 2 - 3) // stride + 1
    M = N * Ho * Wo
    Cp = _round_up(Cout, LANE)            # lane-dense padded channel count

    # padded input, bf16 for the MXU (accumulation stays f32)
    xp = jnp.pad(x.astype(jnp.bfloat16), ((0, 0), (1, 1), (1, 1), (0, 0)))

    # weights -> single (9*Cin, Cp) bf16 slab, kept resident across the grid
    wr = jnp.pad(w.reshape(9 * Cin, Cout).astype(jnp.bfloat16),
                 ((0, 0), (0, Cp - Cout)))

    cparams = pltpu.CompilerParams(
        dimension_semantics=("parallel", "parallel"))

    if stride == 1:
        wrow = W + 2
        row_spec = lambda kh: pl.BlockSpec(
            (1, 1, wrow, Cin), lambda n, ho, kh=kh: (n, ho + kh, 0, 0))
        in_specs = [row_spec(0), row_spec(1), row_spec(2),
                    pl.BlockSpec((9 * Cin, Cp), lambda n, ho: (0, 0))]
        operands = (xp, xp, xp, wr)
        kernel = _make_conv_kernel_s1(Wo)
    else:
        # split padded W into even/odd column phases in the wrapper (pure
        # layout, same total bytes -> no duplication); kernel then only needs
        # contiguous static slices.
        if xp.shape[2] % 2:
            xp = jnp.pad(xp, ((0, 0), (0, 0), (0, 1), (0, 0)))
        xe = xp[:, :, 0::2, :]
        xo = xp[:, :, 1::2, :]
        wh = xe.shape[2]
        row_spec = lambda kh: pl.BlockSpec(
            (1, 1, wh, Cin), lambda n, ho, kh=kh: (n, 2 * ho + kh, 0, 0))
        in_specs = [row_spec(0), row_spec(1), row_spec(2),
                    row_spec(0), row_spec(1), row_spec(2),
                    pl.BlockSpec((9 * Cin, Cp), lambda n, ho: (0, 0))]
        operands = (xe, xe, xe, xo, xo, xo, wr)
        kernel = _make_conv_kernel_s2(Wo)

    conv, stats = pl.pallas_call(
        kernel,
        grid=(N, Ho),
        in_specs=in_specs,
        out_specs=[
            pl.BlockSpec((1, 1, Wo, Cp), lambda n, ho: (n, ho, 0, 0)),
            pl.BlockSpec((1, 1, 2, Cp), lambda n, ho: (n, ho, 0, 0)),
        ],
        out_shape=[
            jax.ShapeDtypeStruct((N, Ho, Wo, Cp), jnp.float32),
            jax.ShapeDtypeStruct((N, Ho, 2, Cp), jnp.float32),
        ],
        compiler_params=cparams,
    )(*operands)

    # Finalize BatchNorm batch statistics over the FULL N*Ho*Wo axis
    # (training-mode forward, biased variance, like nn.BatchNorm2d).
    ssum = jnp.sum(stats, axis=(0, 1))                        # (2, Cp)
    mean = ssum[0] / M
    var = jnp.maximum(ssum[1] / M - mean * mean, 0.0)         # E[x^2] - E[x]^2
    inv = lax.rsqrt(var + BN_EPS)
    gamma_p = jnp.pad(gamma.astype(jnp.float32), (0, Cp - Cout))
    beta_p = jnp.pad(beta.astype(jnp.float32), (0, Cp - Cout))
    scale_v = gamma_p * inv
    shift_v = beta_p - mean * scale_v

    y = pl.pallas_call(
        _bn_relu_kernel,
        grid=(N, Ho),
        in_specs=[
            pl.BlockSpec((1, 1, Wo, Cp), lambda n, ho: (n, ho, 0, 0)),
            pl.BlockSpec((1, Cp), lambda n, ho: (0, 0)),
            pl.BlockSpec((1, Cp), lambda n, ho: (0, 0)),
        ],
        out_specs=pl.BlockSpec((1, 1, Wo, Cp), lambda n, ho: (n, ho, 0, 0)),
        out_shape=jax.ShapeDtypeStruct((N, Ho, Wo, Cp), jnp.float32),
        compiler_params=cparams,
    )(conv, scale_v.reshape(1, Cp), shift_v.reshape(1, Cp))

    return y[..., :Cout]


# ----------------------------------------------------------------------------
# Module glue (pure layout ops): channel shuffle, split, concat
# ----------------------------------------------------------------------------
def channel_shuffle(x, groups):
    """NHWC equivalent of the PyTorch NCHW channel_shuffle."""
    N, H, W, C = x.shape
    cpg = C // groups
    x = x.reshape(N, H, W, groups, cpg)
    x = jnp.swapaxes(x, 3, 4)
    return x.reshape(N, H, W, C)


def _init_conv_bn(key, cin, cout):
    k1, k2, k3 = jax.random.split(key, 3)
    fan_in = cin * 9
    w = jax.random.normal(k1, (3, 3, cin, cout), jnp.float32) * (2.0 / fan_in) ** 0.5
    gamma = 1.0 + 0.1 * jax.random.normal(k2, (cout,), jnp.float32)
    beta = 0.1 * jax.random.normal(k3, (cout,), jnp.float32)
    return {"w": w, "gamma": gamma, "beta": beta}


def init_stconv_branch(key, inp, oup, stride):
    benchmodel = 1 if (inp == oup and stride == 1) else 2
    oup_inc = oup // 2
    params = {"benchmodel": benchmodel, "stride": stride}
    if benchmodel == 1:
        params["branch2"] = _init_conv_bn(key, oup_inc, oup_inc)
    else:
        k1, k2 = jax.random.split(key)
        params["branch1"] = _init_conv_bn(k1, inp, oup_inc)
        params["branch2"] = _init_conv_bn(k2, inp, oup_inc)
    return params


def stconv_branch_forward(params, x):
    stride = params["stride"]
    if params["benchmodel"] == 1:
        c = x.shape[-1]
        tmp1 = x[..., : c // 2]
        tmp2 = x[..., c // 2:]
        b2 = params["branch2"]
        out2 = conv_bn_relu(tmp2, b2["w"], b2["gamma"], b2["beta"], stride)
        out = jnp.concatenate([tmp1, out2], axis=-1)
    else:
        # Fuse the two branches into ONE conv+BN+ReLU call (exact: BN and ReLU
        # are per-channel / per-element), halving input HBM traffic and
        # doubling output lane width.
        b1 = params["branch1"]
        b2 = params["branch2"]
        w_cat = jnp.concatenate([b1["w"], b2["w"]], axis=-1)
        g_cat = jnp.concatenate([b1["gamma"], b2["gamma"]], axis=0)
        be_cat = jnp.concatenate([b1["beta"], b2["beta"]], axis=0)
        out = conv_bn_relu(x, w_cat, g_cat, be_cat, stride)
    return channel_shuffle(out, 2)


def init_basic_block(key, in_channels, out_channels, stride=1):
    k1, k2 = jax.random.split(key)
    return {
        "b0": init_stconv_branch(k1, in_channels, out_channels, stride),
        "b1": init_stconv_branch(k2, out_channels, out_channels, 1),
    }


def basic_block_forward(params, x_nchw):
    # PyTorch-facing interface is NCHW; convert to NHWC internally.
    x = jnp.transpose(x_nchw, (0, 2, 3, 1))
    x = stconv_branch_forward(params["b0"], x)
    x = stconv_branch_forward(params["b1"], x)
    return jnp.transpose(x, (0, 3, 1, 2))


# TODO(synk): BatchNorm running_mean / running_var buffer updates (a training
# side effect that does not change the forward output) are not emulated.


if __name__ == "__main__":
    key = jax.random.PRNGKey(0)
    kp, kx = jax.random.split(key)

    N, C_in, H, W = 2, 4, 16, 16
    C_out, stride = 8, 2  # first StConvBranch -> benchmodel 2, second -> benchmodel 1

    params = init_basic_block(kp, C_in, C_out, stride)
    x = jax.random.normal(kx, (N, C_in, H, W), jnp.float32)

    out = basic_block_forward(params, x)
    out = jax.block_until_ready(out)

    assert out.shape == (N, C_out, H // stride, W // stride), out.shape
    assert bool(jnp.all(jnp.isfinite(out)))
    print("KERNEL_OK")
</pallas_src>

<mosaic_0001>
module attributes {stable_mosaic.version = 11 : i64} {
  func.func @kernel(%arg0: i32, %arg1: i32, %arg2: memref<1x1x9x4xbf16, #tpu.memory_space<vmem>>, %arg3: memref<1x1x9x4xbf16, #tpu.memory_space<vmem>>, %arg4: memref<1x1x9x4xbf16, #tpu.memory_space<vmem>>, %arg5: memref<1x1x9x4xbf16, #tpu.memory_space<vmem>>, %arg6: memref<1x1x9x4xbf16, #tpu.memory_space<vmem>>, %arg7: memref<1x1x9x4xbf16, #tpu.memory_space<vmem>>, %arg8: memref<36x128xbf16, #tpu.memory_space<vmem>>, %arg9: memref<1x1x8x128xf32, #tpu.memory_space<vmem>>, %arg10: memref<1x1x2x128xf32, #tpu.memory_space<vmem>>) attributes {dimension_semantics = [#tpu.dimension_semantics<parallel>, #tpu.dimension_semantics<parallel>], iteration_bounds = array<i64: 2, 8>, scalar_prefetch = 0 : i64, scratch_operands = 0 : i64, tpu.core_type = #tpu.core_type<tc>, window_params = [{transform_indices = @transform_0, window_bounds = array<i64: 1, 1, 9, 4>}, {transform_indices = @transform_1, window_bounds = array<i64: 1, 1, 9, 4>}, {transform_indices = @transform_2, window_bounds = array<i64: 1, 1, 9, 4>}, {transform_indices = @transform_3, window_bounds = array<i64: 1, 1, 9, 4>}, {transform_indices = @transform_4, window_bounds = array<i64: 1, 1, 9, 4>}, {transform_indices = @transform_5, window_bounds = array<i64: 1, 1, 9, 4>}, {pipeline_mode = #tpu.pipeline_mode<synchronous>, transform_indices = @transform_6, window_bounds = array<i64: 36, 128>}, {transform_indices = @transform_7, window_bounds = array<i64: 1, 1, 8, 128>}, {transform_indices = @transform_8, window_bounds = array<i64: 1, 1, 2, 128>}]} {
    %c0 = arith.constant 0 : index
    %c0_0 = arith.constant 0 : index
    %c0_1 = arith.constant 0 : index
    %c0_2 = arith.constant 0 : index
    %0 = vector.load %arg2[%c0, %c0_0, %c0_1, %c0_2] : memref<1x1x9x4xbf16, #tpu.memory_space<vmem>>, vector<1x1x8x4xbf16>
    %1 = vector.shape_cast %0 : vector<1x1x8x4xbf16> to vector<8x4xbf16>
    %c0_3 = arith.constant 0 : index
    %c0_4 = arith.constant 0 : index
    %c0_5 = arith.constant 0 : index
    %c0_6 = arith.constant 0 : index
    %2 = vector.load %arg5[%c0_3, %c0_4, %c0_5, %c0_6] : memref<1x1x9x4xbf16, #tpu.memory_space<vmem>>, vector<1x1x8x4xbf16>
    %3 = vector.shape_cast %2 : vector<1x1x8x4xbf16> to vector<8x4xbf16>
    %c0_7 = arith.constant 0 : index
    %c0_8 = arith.constant 0 : index
    %c1 = arith.constant 1 : index
    %c0_9 = arith.constant 0 : index
    %4 = vector.load %arg2[%c0_7, %c0_8, %c1, %c0_9] : memref<1x1x9x4xbf16, #tpu.memory_space<vmem>>, vector<1x1x8x4xbf16>
    %5 = vector.shape_cast %4 : vector<1x1x8x4xbf16> to vector<8x4xbf16>
    %c0_10 = arith.constant 0 : index
    %c0_11 = arith.constant 0 : index
    %c0_12 = arith.constant 0 : index
    %c0_13 = arith.constant 0 : index
    %6 = vector.load %arg3[%c0_10, %c0_11, %c0_12, %c0_13] : memref<1x1x9x4xbf16, #tpu.memory_space<vmem>>, vector<1x1x8x4xbf16>
    %7 = vector.shape_cast %6 : vector<1x1x8x4xbf16> to vector<8x4xbf16>
    %c0_14 = arith.constant 0 : index
    %c0_15 = arith.constant 0 : index
    %c0_16 = arith.constant 0 : index
    %c0_17 = arith.constant 0 : index
    %8 = vector.load %arg6[%c0_14, %c0_15, %c0_16, %c0_17] : memref<1x1x9x4xbf16, #tpu.memory_space<vmem>>, vector<1x1x8x4xbf16>
    %9 = vector.shape_cast %8 : vector<1x1x8x4xbf16> to vector<8x4xbf16>
    %c0_18 = arith.constant 0 : index
    %c0_19 = arith.constant 0 : index
    %c1_20 = arith.constant 1 : index
    %c0_21 = arith.constant 0 : index
    %10 = vector.load %arg3[%c0_18, %c0_19, %c1_20, %c0_21] : memref<1x1x9x4xbf16, #tpu.memory_space<vmem>>, vector<1x1x8x4xbf16>
    %11 = vector.shape_cast %10 : vector<1x1x8x4xbf16> to vector<8x4xbf16>
    %c0_22 = arith.constant 0 : index
    %c0_23 = arith.constant 0 : index
    %c0_24 = arith.constant 0 : index
    %c0_25 = arith.constant 0 : index
    %12 = vector.load %arg4[%c0_22, %c0_23, %c0_24, %c0_25] : memref<1x1x9x4xbf16, #tpu.memory_space<vmem>>, vector<1x1x8x4xbf16>
    %13 = vector.shape_cast %12 : vector<1x1x8x4xbf16> to vector<8x4xbf16>
    %c0_26 = arith.constant 0 : index
    %c0_27 = arith.constant 0 : index
    %c0_28 = arith.constant 0 : index
    %c0_29 = arith.constant 0 : index
    %14 = vector.load %arg7[%c0_26, %c0_27, %c0_28, %c0_29] : memref<1x1x9x4xbf16, #tpu.memory_space<vmem>>, vector<1x1x8x4xbf16>
    %15 = vector.shape_cast %14 : vector<1x1x8x4xbf16> to vector<8x4xbf16>
    %c0_30 = arith.constant 0 : index
    %c0_31 = arith.constant 0 : index
    %c1_32 = arith.constant 1 : index
    %c0_33 = arith.constant 0 : index
    %16 = vector.load %arg4[%c0_30, %c0_31, %c1_32, %c0_33] : memref<1x1x9x4xbf16, #tpu.memory_space<vmem>>, vector<1x1x8x4xbf16>
    %17 = vector.shape_cast %16 : vector<1x1x8x4xbf16> to vector<8x4xbf16>
    %18 = tpu.concatenate %1, %3, %5, %7, %9, %11, %13, %15, %17 in 1 : vector<8x4xbf16>, vector<8x4xbf16>, vector<8x4xbf16>, vector<8x4xbf16>, vector<8x4xbf16>, vector<8x4xbf16>, vector<8x4xbf16>, vector<8x4xbf16>, vector<8x4xbf16> -> vector<8x36xbf16>
    %c0_34 = arith.constant 0 : index
    %c0_35 = arith.constant 0 : index
    %19 = vector.load %arg8[%c0_34, %c0_35] : memref<36x128xbf16, #tpu.memory_space<vmem>>, vector<36x128xbf16>
    %cst = arith.constant dense<0.000000e+00> : vector<8x128xf32>
    %20 = tpu.matmul %18, %19, %cst {dimension_numbers = #tpu.dot_dimension_numbers<[1], [0], [0], [1], [0, 0, 1, 1], [], []>} : vector<8x36xbf16>, vector<36x128xbf16>, vector<8x128xf32> -> vector<8x128xf32>
    %c0_36 = arith.constant 0 : index
    %c0_37 = arith.constant 0 : index
    %c0_38 = arith.constant 0 : index
    %c0_39 = arith.constant 0 : index
    %21 = vector.load %arg9[%c0_36, %c0_37, %c0_38, %c0_39] : memref<1x1x8x128xf32, #tpu.memory_space<vmem>>, vector<1x1x8x128xf32>
    %22 = vector.shape_cast %21 : vector<1x1x8x128xf32> to vector<8x128xf32>
    %23 = vector.shape_cast %20 : vector<8x128xf32> to vector<1x1x8x128xf32>
    tpu.vector_store %arg9[%c0_36, %c0_37, %c0_38, %c0_39], %23 {strides = array<i32>} : memref<1x1x8x128xf32, #tpu.memory_space<vmem>>, vector<1x1x8x128xf32>,
    %cst_40 = arith.constant dense<0.000000e+00> : vector<128xf32>
    %24 = vector.multi_reduction <add>, %20, %cst_40 [0] : vector<8x128xf32> to vector<128xf32>
    %25 = vector.shape_cast %24 : vector<128xf32> to vector<1x128xf32>
    %c0_41 = arith.constant 0 : index
    %c0_42 = arith.constant 0 : index
    %c0_43 = arith.constant 0 : index
    %c0_44 = arith.constant 0 : index
    %26 = vector.load %arg10[%c0_41, %c0_42, %c0_43, %c0_44] : memref<1x1x2x128xf32, #tpu.memory_space<vmem>>, vector<1x1x1x128xf32>
    %27 = vector.shape_cast %26 : vector<1x1x1x128xf32> to vector<1x128xf32>
    %28 = vector.shape_cast %25 : vector<1x128xf32> to vector<1x1x1x128xf32>
    tpu.vector_store %arg10[%c0_41, %c0_42, %c0_43, %c0_44], %28 {strides = array<i32>} : memref<1x1x2x128xf32, #tpu.memory_space<vmem>>, vector<1x1x1x128xf32>,
    %29 = arith.mulf %20, %20 : vector<8x128xf32>
    %cst_45 = arith.constant dense<0.000000e+00> : vector<128xf32>
    %30 = vector.multi_reduction <add>, %29, %cst_45 [0] : vector<8x128xf32> to vector<128xf32>
    %31 = vector.shape_cast %30 : vector<128xf32> to vector<1x128xf32>
    %c0_46 = arith.constant 0 : index
    %c0_47 = arith.constant 0 : index
    %c1_48 = arith.constant 1 : index
    %c0_49 = arith.constant 0 : index
    %32 = vector.load %arg10[%c0_46, %c0_47, %c1_48, %c0_49] : memref<1x1x2x128xf32, #tpu.memory_space<vmem>>, vector<1x1x1x128xf32>
    %33 = vector.shape_cast %32 : vector<1x1x1x128xf32> to vector<1x128xf32>
    %34 = vector.shape_cast %31 : vector<1x128xf32> to vector<1x1x1x128xf32>
    tpu.vector_store %arg10[%c0_46, %c0_47, %c1_48, %c0_49], %34 {strides = array<i32>} : memref<1x1x2x128xf32, #tpu.memory_space<vmem>>, vector<1x1x1x128xf32>,
    return
  }
  func.func @transform_0(%arg0: i32, %arg1: i32) -> (i32, i32, i32, i32) {
    %c2_i32 = arith.constant 2 : i32
    %0 = arith.muli %c2_i32, %arg1 : i32
    %c0_i32 = arith.constant 0 : i32
    %1 = arith.addi %0, %c0_i32 : i32
    %c0_i32_0 = arith.constant 0 : i32
    %c0_i32_1 = arith.constant 0 : i32
    %c0_i32_2 = arith.constant 0 : i32
    return %arg0, %1, %c0_i32_0, %c0_i32_1 : i32, i32, i32, i32
  }
  func.func @transform_1(%arg0: i32, %arg1: i32) -> (i32, i32, i32, i32) {
    %c2_i32 = arith.constant 2 : i32
    %0 = arith.muli %c2_i32, %arg1 : i32
    %c1_i32 = arith.constant 1 : i32
    %1 = arith.addi %0, %c1_i32 : i32
    %c0_i32 = arith.constant 0 : i32
    %c0_i32_0 = arith.constant 0 : i32
    %c0_i32_1 = arith.constant 0 : i32
    return %arg0, %1, %c0_i32, %c0_i32_0 : i32, i32, i32, i32
  }
  func.func @transform_2(%arg0: i32, %arg1: i32) -> (i32, i32, i32, i32) {
    %c2_i32 = arith.constant 2 : i32
    %0 = arith.muli %c2_i32, %arg1 : i32
    %c2_i32_0 = arith.constant 2 : i32
    %1 = arith.addi %0, %c2_i32_0 : i32
    %c0_i32 = arith.constant 0 : i32
    %c0_i32_1 = arith.constant 0 : i32
    %c0_i32_2 = arith.constant 0 : i32
    return %arg0, %1, %c0_i32, %c0_i32_1 : i32, i32, i32, i32
  }
  func.func @transform_3(%arg0: i32, %arg1: i32) -> (i32, i32, i32, i32) {
    %c2_i32 = arith.constant 2 : i32
    %0 = arith.muli %c2_i32, %arg1 : i32
    %c0_i32 = arith.constant 0 : i32
    %1 = arith.addi %0, %c0_i32 : i32
    %c0_i32_0 = arith.constant 0 : i32
    %c0_i32_1 = arith.constant 0 : i32
    %c0_i32_2 = arith.constant 0 : i32
    return %arg0, %1, %c0_i32_0, %c0_i32_1 : i32, i32, i32, i32
  }
  func.func @transform_4(%arg0: i32, %arg1: i32) -> (i32, i32, i32, i32) {
    %c2_i32 = arith.constant 2 : i32
    %0 = arith.muli %c2_i32, %arg1 : i32
    %c1_i32 = arith.constant 1 : i32
    %1 = arith.addi %0, %c1_i32 : i32
    %c0_i32 = arith.constant 0 : i32
    %c0_i32_0 = arith.constant 0 : i32
    %c0_i32_1 = arith.constant 0 : i32
    return %arg0, %1, %c0_i32, %c0_i32_0 : i32, i32, i32, i32
  }
  func.func @transform_5(%arg0: i32, %arg1: i32) -> (i32, i32, i32, i32) {
    %c2_i32 = arith.constant 2 : i32
    %0 = arith.muli %c2_i32, %arg1 : i32
    %c2_i32_0 = arith.constant 2 : i32
    %1 = arith.addi %0, %c2_i32_0 : i32
    %c0_i32 = arith.constant 0 : i32
    %c0_i32_1 = arith.constant 0 : i32
    %c0_i32_2 = arith.constant 0 : i32
    return %arg0, %1, %c0_i32, %c0_i32_1 : i32, i32, i32, i32
  }
  func.func @transform_6(%arg0: i32, %arg1: i32) -> (i32, i32) {
    %c0_i32 = arith.constant 0 : i32
    %c0_i32_0 = arith.constant 0 : i32
    %c0_i32_1 = arith.constant 0 : i32
    return %c0_i32, %c0_i32_0 : i32, i32
  }
  func.func @transform_7(%arg0: i32, %arg1: i32) -> (i32, i32, i32, i32) {
    %c0_i32 = arith.constant 0 : i32
    %c0_i32_0 = arith.constant 0 : i32
    %c0_i32_1 = arith.constant 0 : i32
    return %arg0, %arg1, %c0_i32, %c0_i32_0 : i32, i32, i32, i32
  }
  func.func @transform_8(%arg0: i32, %arg1: i32) -> (i32, i32, i32, i32) {
    %c0_i32 = arith.constant 0 : i32
    %c0_i32_0 = arith.constant 0 : i32
    %c0_i32_1 = arith.constant 0 : i32
    return %arg0, %arg1, %c0_i32, %c0_i32_0 : i32, i32, i32, i32
  }
}

</mosaic_0001>

<llo_original>
// kernel: tpu_custom_call.1
$region0: #{tpu_custom_call.1}
  #allocation0 [shape = 'u32[]', space=smem, size = 0x4, offset = 0x4, fixed_abs, tag = 'smem constant byte address 0x4 - core index']
  #allocation1 [shape = 'u32[144,128]{1,0:T(1,128)}', space=vmem, size = 0x12000, scoped, tag = 'internal scratch']
  %s0 = inlined_call_operand.vmem [shape: bf16[2,18,9,4], index: 0, kind: input, shape index: {}]
  %s1 = inlined_call_operand.vmem [shape: bf16[2,18,9,4], index: 1, kind: input, shape index: {}]
  %s2 = inlined_call_operand.vmem [shape: bf16[2,18,9,4], index: 2, kind: input, shape index: {}]
  %s3 = inlined_call_operand.vmem [shape: bf16[2,18,9,4], index: 3, kind: input, shape index: {}]
  %s4 = inlined_call_operand.vmem [shape: bf16[2,18,9,4], index: 4, kind: input, shape index: {}]
  %s5 = inlined_call_operand.vmem [shape: bf16[2,18,9,4], index: 5, kind: input, shape index: {}]
  %s6 = inlined_call_operand.vmem [shape: bf16[36,128], index: 6, kind: input, shape index: {}]
  %s7 = inlined_call_operand.hbm [shape: f32[2,8,8,128], index: 7, kind: output, shape index: {0}]
  %s8 = inlined_call_operand.hbm [shape: f32[2,8,2,128], index: 8, kind: output, shape index: {1}]
  %9 = xla_tuple %s7, %s8
  %s10 = sld [smem:[#allocation0]]
  $region69: #{tpu_custom_call.1} parent=0
    _
  %s12 = ssub.s32 1, %s10
  %s13 = scalar_select 0, %s12, %s10
  $region1: #{tpu_custom_call.1} parent=0
    #allocation2 [shape = 'u8[8192]{0}', space=vmem, size = 0x2000, scoped, tag = 'output window, operand 0']
    #allocation3 [shape = 's32[2]{0}', space=sflag, size = 0x8, scoped, tag = 'scoped memory for tpu_custom_call.1']
    #allocation4 [shape = 'u8[2048]{0}', space=vmem, size = 0x800, scoped, tag = 'output window, operand 1']
    #allocation5 [shape = 's32[2]{0}', space=sflag, size = 0x8, scoped, tag = 'scoped memory for tpu_custom_call.1']
    %14 = vsyncpa [#allocation3], 0
    %s15 = scalar_lea.sflag [#allocation3], 1
    %16 = vsyncpa %s15, 0
    %17 = vsyncpa [#allocation5], 0
    %s18 = scalar_lea.sflag [#allocation5], 1
    %19 = vsyncpa %s18, 0
    loop: start=0, step=1, limit=18
    $region2: #{tpu_custom_call.1} parent=1 // loop_pre_header
      _
    $region3: #{tpu_custom_call.1} parent=1 // loop_header
      %s21 = sphi 0, %s25
      %p22 = scmp.ge.s32.totalorder %s21, 18
      %s28 = sphi 0, %s40
      %s29 = sphi 0, %s36
      %s30 = sphi 0, %s28
      %s31 = sphi 0, %s29
      %s32 = sphi 0, %s30
      %s33 = sphi 0, %s31
      %s47 = sphi 0, %s49
      %s50 = sphi 0, %s47
      %s51 = sphi 0, %s50
      %s67 = sphi 0, %s51
      %s79 = sphi 0, %s81
      %s82 = sphi 0, %s79
      %s83 = sphi 0, %s82
      %s99 = sphi 0, %s83
      %s111 = sphi 0, %s113
      %s114 = sphi 0, %s111
      %s115 = sphi 0, %s114
      %s131 = sphi 0, %s115
      %s141 = sphi 0, %s143
      %s144 = sphi 0, %s141
      %s145 = sphi 0, %s144
      %s161 = sphi 0, %s145
      %s173 = sphi 0, %s175
      %s176 = sphi 0, %s173
      %s177 = sphi 0, %s176
      %s193 = sphi 0, %s177
      %s205 = sphi 0, %s207
      %s208 = sphi 0, %s205
      %s209 = sphi 0, %s208
      %s225 = sphi 0, %s209
      %s229 = sphi 0, %s229
      %s231 = sphi 0, %s229
      %s232 = sphi 0, %s231
      %s246 = sphi 0, %s232
      %s254 = sphi 0, %s256
      %s257 = sphi 0, %s254
      %s258 = sphi 0, %s257
      %s274 = sphi 0, %s258
      %s282 = sphi 0, %s284
      %s285 = sphi 0, %s282
      %s286 = sphi 0, %s285
      %s302 = sphi 0, %s286
    $region4: #{tpu_custom_call.1} parent=1 // loop_header_branch
      %24 = sbr.rel (%p22) target = $region8
    $region5: #{tpu_custom_call.1} parent=1 // loop_body
      %s26 = ssub.s32 %s21, 1
      %s27 = ssub.s32 %s21, 2
      %s34 = sadd.s32 1, %s29
      %p35 = scmp.ge.s32.totalorder %s34, 8
      %s36 = scalar_select %p35, 0, %s34
      %s37 = sadd.s32 1, %s28
      %s38 = scalar_select %p35, %s37, %s28
      %p39 = scmp.ge.s32.totalorder %s38, 2
      %s40 = scalar_select %p39, 0, %s38
      %s41 = smul.u32 %s29, 2
      %s42 = smul.u32 %s36, 2
      %s43 = ssub.s32 %s28, %s40
      %s44 = ssub.s32 %s41, %s42
      %s45 = sor.u32 %s43, %s44
      %p46 = scmp.eq.s32.totalorder %s45, 0
      %s48 = sadd.s32 %s47, 1
      %s49 = scalar_select %p46, %s47, %s48
      %p52 = pneg %p46
      %p53 = scmp.eq.s32.totalorder %s21, 15
      %p54 = por %p52, %p53
      %p55 = scmp.ne.s32.totalorder %s47, %s50
      %p56 = scmp.eq.s32.totalorder %s21, 0
      %p57 = por %p55, %p56
      %p58 = scmp.ne.s32.totalorder %s47, %s50
      %p59 = scmp.eq.s32.totalorder %s26, 15
      %p60 = por %p58, %p59
      %p61 = scmp.ne.s32.totalorder %s50, %s51
      %p62 = scmp.eq.s32.totalorder %s26, 0
      %p63 = por %p61, %p62
      %p64 = scmp.ne.s32.totalorder %s50, %s51
      %p65 = scmp.eq.s32.totalorder %s27, 15
      %p66 = por %p64, %p65
      %p68 = scmp.ne.s32.totalorder %s51, %s67
      %p69 = scmp.eq.s32.totalorder %s27, 0
      %p70 = por %p68, %p69
      %s71 = smul.u32 %s29, 2
      %s72 = sadd.s32 %s71, 1
      %s73 = smul.u32 %s36, 2
      %s74 = sadd.s32 %s73, 1
      %s75 = ssub.s32 %s28, %s40
      %s76 = ssub.s32 %s72, %s74
      %s77 = sor.u32 %s75, %s76
      %p78 = scmp.eq.s32.totalorder %s77, 0
      %s80 = sadd.s32 %s79, 1
      %s81 = scalar_select %p78, %s79, %s80
      %p84 = pneg %p78
      %p85 = scmp.eq.s32.totalorder %s21, 15
      %p86 = por %p84, %p85
      %p87 = scmp.ne.s32.totalorder %s79, %s82
      %p88 = scmp.eq.s32.totalorder %s21, 0
      %p89 = por %p87, %p88
      %p90 = scmp.ne.s32.totalorder %s79, %s82
      %p91 = scmp.eq.s32.totalorder %s26, 15
      %p92 = por %p90, %p91
      %p93 = scmp.ne.s32.totalorder %s82, %s83
      %p94 = scmp.eq.s32.totalorder %s26, 0
      %p95 = por %p93, %p94
      %p96 = scmp.ne.s32.totalorder %s82, %s83
      %p97 = scmp.eq.s32.totalorder %s27, 15
      %p98 = por %p96, %p97
      %p100 = scmp.ne.s32.totalorder %s83, %s99
      %p101 = scmp.eq.s32.totalorder %s27, 0
      %p102 = por %p100, %p101
      %s103 = smul.u32 %s29, 2
      %s104 = sadd.s32 %s103, 2
      %s105 = smul.u32 %s36, 2
      %s106 = sadd.s32 %s105, 2
      %s107 = ssub.s32 %s28, %s40
      %s108 = ssub.s32 %s104, %s106
      %s109 = sor.u32 %s107, %s108
      %p110 = scmp.eq.s32.totalorder %s109, 0
      %s112 = sadd.s32 %s111, 1
      %s113 = scalar_select %p110, %s111, %s112
      %p116 = pneg %p110
      %p117 = scmp.eq.s32.totalorder %s21, 15
      %p118 = por %p116, %p117
      %p119 = scmp.ne.s32.totalorder %s111, %s114
      %p120 = scmp.eq.s32.totalorder %s21, 0
      %p121 = por %p119, %p120
      %p122 = scmp.ne.s32.totalorder %s111, %s114
      %p123 = scmp.eq.s32.totalorder %s26, 15
      %p124 = por %p122, %p123
      %p125 = scmp.ne.s32.totalorder %s114, %s115
      %p126 = scmp.eq.s32.totalorder %s26, 0
      %p127 = por %p125, %p126
      %p128 = scmp.ne.s32.totalorder %s114, %s115
      %p129 = scmp.eq.s32.totalorder %s27, 15
      %p130 = por %p128, %p129
      %p132 = scmp.ne.s32.totalorder %s115, %s131
      %p133 = scmp.eq.s32.totalorder %s27, 0
      %p134 = por %p132, %p133
      %s135 = smul.u32 %s29, 2
      %s136 = smul.u32 %s36, 2
      %s137 = ssub.s32 %s28, %s40
      %s138 = ssub.s32 %s135, %s136
      %s139 = sor.u32 %s137, %s138
      %p140 = scmp.eq.s32.totalorder %s139, 0
      %s142 = sadd.s32 %s141, 1
      %s143 = scalar_select %p140, %s141, %s142
      %p146 = pneg %p140
      %p147 = scmp.eq.s32.totalorder %s21, 15
      %p148 = por %p146, %p147
      %p149 = scmp.ne.s32.totalorder %s141, %s144
      %p150 = scmp.eq.s32.totalorder %s21, 0
      %p151 = por %p149, %p150
      %p152 = scmp.ne.s32.totalorder %s141, %s144
      %p153 = scmp.eq.s32.totalorder %s26, 15
      %p154 = por %p152, %p153
      %p155 = scmp.ne.s32.totalorder %s144, %s145
      %p156 = scmp.eq.s32.totalorder %s26, 0
      %p157 = por %p155, %p156
      %p158 = scmp.ne.s32.totalorder %s144, %s145
      %p159 = scmp.eq.s32.totalorder %s27, 15
      %p160 = por %p158, %p159
      %p162 = scmp.ne.s32.totalorder %s145, %s161
      %p163 = scmp.eq.s32.totalorder %s27, 0
      %p164 = por %p162, %p163
      %s165 = smul.u32 %s29, 2
      %s166 = sadd.s32 %s165, 1
      %s167 = smul.u32 %s36, 2
      %s168 = sadd.s32 %s167, 1
      %s169 = ssub.s32 %s28, %s40
      %s170 = ssub.s32 %s166, %s168
      %s171 = sor.u32 %s169, %s170
      %p172 = scmp.eq.s32.totalorder %s171, 0
      %s174 = sadd.s32 %s173, 1
      %s175 = scalar_select %p172, %s173, %s174
      %p178 = pneg %p172
      %p179 = scmp.eq.s32.totalorder %s21, 15
      %p180 = por %p178, %p179
      %p181 = scmp.ne.s32.totalorder %s173, %s176
      %p182 = scmp.eq.s32.totalorder %s21, 0
      %p183 = por %p181, %p182
      %p184 = scmp.ne.s32.totalorder %s173, %s176
      %p185 = scmp.eq.s32.totalorder %s26, 15
      %p186 = por %p184, %p185
      %p187 = scmp.ne.s32.totalorder %s176, %s177
      %p188 = scmp.eq.s32.totalorder %s26, 0
      %p189 = por %p187, %p188
      %p190 = scmp.ne.s32.totalorder %s176, %s177
      %p191 = scmp.eq.s32.totalorder %s27, 15
      %p192 = por %p190, %p191
      %p194 = scmp.ne.s32.totalorder %s177, %s193
      %p195 = scmp.eq.s32.totalorder %s27, 0
      %p196 = por %p194, %p195
      %s197 = smul.u32 %s29, 2
      %s198 = sadd.s32 %s197, 2
      %s199 = smul.u32 %s36, 2
      %s200 = sadd.s32 %s199, 2
      %s201 = ssub.s32 %s28, %s40
      %s202 = ssub.s32 %s198, %s200
      %s203 = sor.u32 %s201, %s202
      %p204 = scmp.eq.s32.totalorder %s203, 0
      %s206 = sadd.s32 %s205, 1
      %s207 = scalar_select %p204, %s205, %s206
      %p210 = pneg %p204
      %p211 = scmp.eq.s32.totalorder %s21, 15
      %p212 = por %p210, %p211
      %p213 = scmp.ne.s32.totalorder %s205, %s208
      %p214 = scmp.eq.s32.totalorder %s21, 0
      %p215 = por %p213, %p214
      %p216 = scmp.ne.s32.totalorder %s205, %s208
      %p217 = scmp.eq.s32.totalorder %s26, 15
      %p218 = por %p216, %p217
      %p219 = scmp.ne.s32.totalorder %s208, %s209
      %p220 = scmp.eq.s32.totalorder %s26, 0
      %p221 = por %p219, %p220
      %p222 = scmp.ne.s32.totalorder %s208, %s209
      %p223 = scmp.eq.s32.totalorder %s27, 15
      %p224 = por %p222, %p223
      %p226 = scmp.ne.s32.totalorder %s209, %s225
      %p227 = scmp.eq.s32.totalorder %s27, 0
      %p228 = por %p226, %p227
      %s230 = sadd.s32 %s229, 1
      %p233 = scmp.eq.s32.totalorder %s21, 15
      %p234 = scmp.ne.s32.totalorder %s229, %s231
      %p235 = scmp.eq.s32.totalorder %s21, 0
      %p236 = por %p234, %p235
      %p237 = scmp.ne.s32.totalorder %s229, %s231
      %p238 = scmp.eq.s32.totalorder %s26, 15
      %p239 = por %p237, %p238
      %p240 = scmp.ne.s32.totalorder %s231, %s232
      %p241 = scmp.eq.s32.totalorder %s26, 0
      %p242 = por %p240, %p241
      %p243 = scmp.ne.s32.totalorder %s231, %s232
      %p244 = scmp.eq.s32.totalorder %s27, 15
      %p245 = por %p243, %p244
      %p247 = scmp.ne.s32.totalorder %s232, %s246
      %p248 = scmp.eq.s32.totalorder %s27, 0
      %p249 = por %p247, %p248
      %s250 = ssub.s32 %s28, %s40
      %s251 = ssub.s32 %s29, %s36
      %s252 = sor.u32 %s250, %s251
      %p253 = scmp.eq.s32.totalorder %s252, 0
      %s255 = sadd.s32 %s254, 1
      %s256 = scalar_select %p253, %s254, %s255
      %p259 = pneg %p253
      %p260 = scmp.eq.s32.totalorder %s21, 15
      %p261 = por %p259, %p260
      %p262 = scmp.ne.s32.totalorder %s254, %s257
      %p263 = scmp.eq.s32.totalorder %s21, 0
      %p264 = por %p262, %p263
      %p265 = scmp.ne.s32.totalorder %s254, %s257
      %p266 = scmp.eq.s32.totalorder %s26, 15
      %p267 = por %p265, %p266
      %p268 = scmp.ne.s32.totalorder %s257, %s258
      %p269 = scmp.eq.s32.totalorder %s26, 0
      %p270 = por %p268, %p269
      %p271 = scmp.ne.s32.totalorder %s257, %s258
      %p272 = scmp.eq.s32.totalorder %s27, 15
      %p273 = por %p271, %p272
      %p275 = scmp.ne.s32.totalorder %s258, %s274
      %p276 = scmp.eq.s32.totalorder %s27, 0
      %p277 = por %p275, %p276
      %s278 = ssub.s32 %s28, %s40
      %s279 = ssub.s32 %s29, %s36
      %s280 = sor.u32 %s278, %s279
      %p281 = scmp.eq.s32.totalorder %s280, 0
      %s283 = sadd.s32 %s282, 1
      %s284 = scalar_select %p281, %s282, %s283
      %p287 = pneg %p281
      %p288 = scmp.eq.s32.totalorder %s21, 15
      %p289 = por %p287, %p288
      %p290 = scmp.ne.s32.totalorder %s282, %s285
      %p291 = scmp.eq.s32.totalorder %s21, 0
      %p292 = por %p290, %p291
      %p293 = scmp.ne.s32.totalorder %s282, %s285
      %p294 = scmp.eq.s32.totalorder %s26, 15
      %p295 = por %p293, %p294
      %p296 = scmp.ne.s32.totalorder %s285, %s286
      %p297 = scmp.eq.s32.totalorder %s26, 0
      %p298 = por %p296, %p297
      %p299 = scmp.ne.s32.totalorder %s285, %s286
      %p300 = scmp.eq.s32.totalorder %s27, 15
      %p301 = por %p299, %p300
      %p303 = scmp.ne.s32.totalorder %s286, %s302
      %p304 = scmp.eq.s32.totalorder %s27, 0
      %p305 = por %p303, %p304
      %p306 = scmp.le.s32.totalorder 1, %s21
      %p307 = scmp.lt.s32.totalorder %s21, 17
      %p308 = pnand %p306, %p307
      %p309 = pneg %p308
      // Predicated region
      $region9: #{tpu_custom_call.1} parent=5 // pred_check
        _
      $region10: #{tpu_custom_call.1} parent=5 // pred_check_branch
        %311 = sbr.rel (%p308) target = $region12
      $region11: #{tpu_custom_call.1} parent=5 // pred_region
        %s312 = ssub.s32 %s21, 1
        // Predicated region
        $region13: #{tpu_custom_call.1} parent=11 // pred_check
          %p313 = pneg %p242
        $region14: #{tpu_custom_call.1} parent=11 // pred_check_branch
          %315 = sbr.rel (%p313) target = $region16
        $region15: #{tpu_custom_call.1} parent=11 // pred_region
          _
        $region16: #{tpu_custom_call.1} parent=11 // pred_fallthru
          _
      $region12: #{tpu_custom_call.1} parent=5 // pred_fallthru
        _
      %p316 = scmp.lt.s32.totalorder %s21, 16
      // Predicated region
      $region17: #{tpu_custom_call.1} parent=5 // pred_check
        %p317 = pneg %p316
      $region18: #{tpu_custom_call.1} parent=5 // pred_check_branch
        %319 = sbr.rel (%p317) target = $region20
      $region19: #{tpu_custom_call.1} parent=5 // pred_region
        // Predicated region
        $region21: #{tpu_custom_call.1} parent=19 // pred_check
          %p320 = pneg %p57
        $region22: #{tpu_custom_call.1} parent=19 // pred_check_branch
          %322 = sbr.rel (%p320) target = $region24
        $region23: #{tpu_custom_call.1} parent=19 // pred_region
          %s323 = smul.u32 %s29, 2
          %p324 = scmp.lt.s32.totalorder %s28, 1
          %s325 = scalar_select %p324, %s28, 1
          %p326 = scmp.lt.s32.totalorder %s323, 17
          %s327 = scalar_select %p326, %s323, 17
          %s328 = smul.addr %s327, 2
          %s329 = smul.addr %s325, 36
          %s330 = sadd.s32 %s328, %s329
          %s331 = smul.addr %s330, 4
          %s332 = scalar_lea.vmem %s0, %s331
          %s333 = smul.u32 %s29, 2
        $region24: #{tpu_custom_call.1} parent=19 // pred_fallthru
          _
        // Predicated region
        $region25: #{tpu_custom_call.1} parent=19 // pred_check
          %p334 = pneg %p89
        $region26: #{tpu_custom_call.1} parent=19 // pred_check_branch
          %336 = sbr.rel (%p334) target = $region28
        $region27: #{tpu_custom_call.1} parent=19 // pred_region
          %s337 = smul.u32 %s29, 2
          %s338 = sadd.s32 %s337, 1
          %p339 = scmp.lt.s32.totalorder %s28, 1
          %s340 = scalar_select %p339, %s28, 1
          %p341 = scmp.lt.s32.totalorder %s338, 17
          %s342 = scalar_select %p341, %s338, 17
          %s343 = smul.addr %s342, 2
          %s344 = smul.addr %s340, 36
          %s345 = sadd.s32 %s343, %s344
          %s346 = smul.addr %s345, 4
          %s347 = scalar_lea.vmem %s1, %s346
          %s348 = smul.u32 %s29, 2
          %s349 = sadd.s32 %s348, 1
        $region28: #{tpu_custom_call.1} parent=19 // pred_fallthru
          _
        // Predicated region
        $region29: #{tpu_custom_call.1} parent=19 // pred_check
          %p350 = pneg %p121
        $region30: #{tpu_custom_call.1} parent=19 // pred_check_branch
          %352 = sbr.rel (%p350) target = $region32
        $region31: #{tpu_custom_call.1} parent=19 // pred_region
          %s353 = smul.u32 %s29, 2
          %s354 = sadd.s32 %s353, 2
          %p355 = scmp.lt.s32.totalorder %s28, 1
          %s356 = scalar_select %p355, %s28, 1
          %p357 = scmp.lt.s32.totalorder %s354, 17
          %s358 = scalar_select %p357, %s354, 17
          %s359 = smul.addr %s358, 2
          %s360 = smul.addr %s356, 36
          %s361 = sadd.s32 %s359, %s360
          %s362 = smul.addr %s361, 4
          %s363 = scalar_lea.vmem %s2, %s362
          %s364 = smul.u32 %s29, 2
          %s365 = sadd.s32 %s364, 2
        $region32: #{tpu_custom_call.1} parent=19 // pred_fallthru
          _
        // Predicated region
        $region33: #{tpu_custom_call.1} parent=19 // pred_check
          %p366 = pneg %p151
        $region34: #{tpu_custom_call.1} parent=19 // pred_check_branch
          %368 = sbr.rel (%p366) target = $region36
        $region35: #{tpu_custom_call.1} parent=19 // pred_region
          %s369 = smul.u32 %s29, 2
          %p370 = scmp.lt.s32.totalorder %s28, 1
          %s371 = scalar_select %p370, %s28, 1
          %p372 = scmp.lt.s32.totalorder %s369, 17
          %s373 = scalar_select %p372, %s369, 17
          %s374 = smul.addr %s373, 2
          %s375 = smul.addr %s371, 36
          %s376 = sadd.s32 %s374, %s375
          %s377 = smul.addr %s376, 4
          %s378 = scalar_lea.vmem %s3, %s377
          %s379 = smul.u32 %s29, 2
        $region36: #{tpu_custom_call.1} parent=19 // pred_fallthru
          _
        // Predicated region
        $region37: #{tpu_custom_call.1} parent=19 // pred_check
          %p380 = pneg %p183
        $region38: #{tpu_custom_call.1} parent=19 // pred_check_branch
          %382 = sbr.rel (%p380) target = $region40
        $region39: #{tpu_custom_call.1} parent=19 // pred_region
          %s383 = smul.u32 %s29, 2
          %s384 = sadd.s32 %s383, 1
          %p385 = scmp.lt.s32.totalorder %s28, 1
          %s386 = scalar_select %p385, %s28, 1
          %p387 = scmp.lt.s32.totalorder %s384, 17
          %s388 = scalar_select %p387, %s384, 17
          %s389 = smul.addr %s388, 2
          %s390 = smul.addr %s386, 36
          %s391 = sadd.s32 %s389, %s390
          %s392 = smul.addr %s391, 4
          %s393 = scalar_lea.vmem %s4, %s392
          %s394 = smul.u32 %s29, 2
          %s395 = sadd.s32 %s394, 1
        $region40: #{tpu_custom_call.1} parent=19 // pred_fallthru
          _
        // Predicated region
        $region41: #{tpu_custom_call.1} parent=19 // pred_check
          %p396 = pneg %p215
        $region42: #{tpu_custom_call.1} parent=19 // pred_check_branch
          %398 = sbr.rel (%p396) target = $region44
        $region43: #{tpu_custom_call.1} parent=19 // pred_region
          %s399 = smul.u32 %s29, 2
          %s400 = sadd.s32 %s399, 2
          %p401 = scmp.lt.s32.totalorder %s28, 1
          %s402 = scalar_select %p401, %s28, 1
          %p403 = scmp.lt.s32.totalorder %s400, 17
          %s404 = scalar_select %p403, %s400, 17
          %s405 = smul.addr %s404, 2
          %s406 = smul.addr %s402, 36
          %s407 = sadd.s32 %s405, %s406
          %s408 = smul.addr %s407, 4
          %s409 = scalar_lea.vmem %s5, %s408
          %s410 = smul.u32 %s29, 2
          %s411 = sadd.s32 %s410, 2
        $region44: #{tpu_custom_call.1} parent=19 // pred_fallthru
          _
      $region20: #{tpu_custom_call.1} parent=5 // pred_fallthru
        _
      %p412 = scmp.le.s32.totalorder 1, %s21
      %p413 = scmp.lt.s32.totalorder %s21, 17
      %p414 = pnand %p412, %p413
      %p415 = pneg %p414
      // Predicated region
      $region45: #{tpu_custom_call.1} parent=5 // pred_check
        _
      $region46: #{tpu_custom_call.1} parent=5 // pred_check_branch
        %417 = sbr.rel (%p414) target = $region48
      $region47: #{tpu_custom_call.1} parent=5 // pred_region
        %s418 = ssub.s32 %s21, 1
        %s419 = smul.u32 %s31, 2
        %p420 = scmp.lt.s32.totalorder %s30, 1
        %s421 = scalar_select %p420, %s30, 1
        %p422 = scmp.lt.s32.totalorder %s419, 17
        %s423 = scalar_select %p422, %s419, 17
        %s424 = smul.addr %s423, 2
        %s425 = smul.addr %s421, 36
        %s426 = sadd.s32 %s424, %s425
        %s427 = smul.addr %s426, 4
        %s428 = scalar_lea.vmem %s0, %s427
        %p429 = pneg %p63
        %p430 = pneg %p60
        %s431 = smul.u32 %s31, 2
        %s432 = sadd.s32 %s431, 1
        %p433 = scmp.lt.s32.totalorder %s30, 1
        %s434 = scalar_select %p433, %s30, 1
        %p435 = scmp.lt.s32.totalorder %s432, 17
        %s436 = scalar_select %p435, %s432, 17
        %s437 = smul.addr %s436, 2
        %s438 = smul.addr %s434, 36
        %s439 = sadd.s32 %s437, %s438
        %s440 = smul.addr %s439, 4
        %s441 = scalar_lea.vmem %s1, %s440
        %p442 = pneg %p95
        %p443 = pneg %p92
        %s444 = smul.u32 %s31, 2
        %s445 = sadd.s32 %s444, 2
        %p446 = scmp.lt.s32.totalorder %s30, 1
        %s447 = scalar_select %p446, %s30, 1
        %p448 = scmp.lt.s32.totalorder %s445, 17
        %s449 = scalar_select %p448, %s445, 17
        %s450 = smul.addr %s449, 2
        %s451 = smul.addr %s447, 36
        %s452 = sadd.s32 %s450, %s451
        %s453 = smul.addr %s452, 4
        %s454 = scalar_lea.vmem %s2, %s453
        %p455 = pneg %p127
        %p456 = pneg %p124
        %s457 = smul.u32 %s31, 2
        %p458 = scmp.lt.s32.totalorder %s30, 1
        %s459 = scalar_select %p458, %s30, 1
        %p460 = scmp.lt.s32.totalorder %s457, 17
        %s461 = scalar_select %p460, %s457, 17
        %s462 = smul.addr %s461, 2
        %s463 = smul.addr %s459, 36
        %s464 = sadd.s32 %s462, %s463
        %s465 = smul.addr %s464, 4
        %s466 = scalar_lea.vmem %s3, %s465
        %p467 = pneg %p157
        %p468 = pneg %p154
        %s469 = smul.u32 %s31, 2
        %s470 = sadd.s32 %s469, 1
        %p471 = scmp.lt.s32.totalorder %s30, 1
        %s472 = scalar_select %p471, %s30, 1
        %p473 = scmp.lt.s32.totalorder %s470, 17
        %s474 = scalar_select %p473, %s470, 17
        %s475 = smul.addr %s474, 2
        %s476 = smul.addr %s472, 36
        %s477 = sadd.s32 %s475, %s476
        %s478 = smul.addr %s477, 4
        %s479 = scalar_lea.vmem %s4, %s478
        %p480 = pneg %p189
        %p481 = pneg %p186
        %s482 = smul.u32 %s31, 2
        %s483 = sadd.s32 %s482, 2
        %p484 = scmp.lt.s32.totalorder %s30, 1
        %s485 = scalar_select %p484, %s30, 1
        %p486 = scmp.lt.s32.totalorder %s483, 17
        %s487 = scalar_select %p486, %s483, 17
        %s488 = smul.addr %s487, 2
        %s489 = smul.addr %s485, 36
        %s490 = sadd.s32 %s488, %s489
        %s491 = smul.addr %s490, 4
        %s492 = scalar_lea.vmem %s5, %s491
        %p493 = pneg %p221
        %p494 = pneg %p218
        %p495 = pneg %p242
        %p496 = pneg %p239
        %p497 = pneg %p270
        %p498 = pneg %p267
        %s499 = sand.u32 %s257, 1
        %s500 = scalar_lea.sflag [#allocation3], %s499
        %s501 = sand.u32 %s257, 1
        %s502 = smul.addr %s501, 8
        %s503 = scalar_lea.vmem [#allocation2], %s502
        %p504 = pneg %p298
        %p505 = pneg %p295
        %s506 = sand.u32 %s285, 1
        %s507 = scalar_lea.sflag [#allocation5], %s506
        %s508 = sand.u32 %s285, 1
        %s509 = smul.addr %s508, 2
        %s510 = scalar_lea.vmem [#allocation4], %s509
        %s511 = smul.u32 %s31, 2
        %p512 = scmp.lt.s32.totalorder %s30, 1
        %s513 = scalar_select %p512, %s30, 1
        %p514 = scmp.lt.s32.totalorder %s511, 17
        %s515 = scalar_select %p514, %s511, 17
        %s516 = smul.addr %s515, 2
        %s517 = smul.addr %s513, 36
        %s518 = sadd.s32 %s516, %s517
        %s519 = smul.addr %s518, 4
        %s520 = scalar_lea.vmem %s0, %s519
        %s521 = smul.u32 %s31, 2
        %s522 = smul.u32 %s31, 2
        %s523 = sadd.s32 %s522, 1
        %p524 = scmp.lt.s32.totalorder %s30, 1
        %s525 = scalar_select %p524, %s30, 1
        %p526 = scmp.lt.s32.totalorder %s523, 17
        %s527 = scalar_select %p526, %s523, 17
        %s528 = smul.addr %s527, 2
        %s529 = smul.addr %s525, 36
        %s530 = sadd.s32 %s528, %s529
        %s531 = smul.addr %s530, 4
        %s532 = scalar_lea.vmem %s1, %s531
        %s533 = smul.u32 %s31, 2
        %s534 = sadd.s32 %s533, 1
        %s535 = smul.u32 %s31, 2
        %s536 = sadd.s32 %s535, 2
        %p537 = scmp.lt.s32.totalorder %s30, 1
        %s538 = scalar_select %p537, %s30, 1
        %p539 = scmp.lt.s32.totalorder %s536, 17
        %s540 = scalar_select %p539, %s536, 17
        %s541 = smul.addr %s540, 2
        %s542 = smul.addr %s538, 36
        %s543 = sadd.s32 %s541, %s542
        %s544 = smul.addr %s543, 4
        %s545 = scalar_lea.vmem %s2, %s544
        %s546 = smul.u32 %s31, 2
        %s547 = sadd.s32 %s546, 2
        %s548 = smul.u32 %s31, 2
        %p549 = scmp.lt.s32.totalorder %s30, 1
        %s550 = scalar_select %p549, %s30, 1
        %p551 = scmp.lt.s32.totalorder %s548, 17
        %s552 = scalar_select %p551, %s548, 17
        %s553 = smul.addr %s552, 2
        %s554 = smul.addr %s550, 36
        %s555 = sadd.s32 %s553, %s554
        %s556 = smul.addr %s555, 4
        %s557 = scalar_lea.vmem %s3, %s556
        %s558 = smul.u32 %s31, 2
        %s559 = smul.u32 %s31, 2
        %s560 = sadd.s32 %s559, 1
        %p561 = scmp.lt.s32.totalorder %s30, 1
        %s562 = scalar_select %p561, %s30, 1
        %p563 = scmp.lt.s32.totalorder %s560, 17
        %s564 = scalar_select %p563, %s560, 17
        %s565 = smul.addr %s564, 2
        %s566 = smul.addr %s562, 36
        %s567 = sadd.s32 %s565, %s566
        %s568 = smul.addr %s567, 4
        %s569 = scalar_lea.vmem %s4, %s568
        %s570 = smul.u32 %s31, 2
        %s571 = sadd.s32 %s570, 1
        %s572 = smul.u32 %s31, 2
        %s573 = sadd.s32 %s572, 2
        %p574 = scmp.lt.s32.totalorder %s30, 1
        %s575 = scalar_select %p574, %s30, 1
        %p576 = scmp.lt.s32.totalorder %s573, 17
        %s577 = scalar_select %p576, %s573, 17
        %s578 = smul.addr %s577, 2
        %s579 = smul.addr %s575, 36
        %s580 = sadd.s32 %s578, %s579
        %s581 = smul.addr %s580, 4
        %s582 = scalar_lea.vmem %s5, %s581
        %s583 = smul.u32 %s31, 2
        %s584 = sadd.s32 %s583, 2
        %v586 = vld [vmem:[%s520] sm:$0xf]
        %v587 = vld [vmem:[%s557] sm:$0xf]
        %v588 = vld [vmem:[%s520 + $0x4] sm:$0x1]
        %v589 = vld [vmem:[%s532] sm:$0xf]
        %v590 = vld [vmem:[%s569] sm:$0xf]
        %v591 = vld [vmem:[%s532 + $0x4] sm:$0x1]
        %v592 = vld [vmem:[%s545] sm:$0xf]
        %v593 = vld [vmem:[%s582] sm:$0xf]
        %v594 = vld [vmem:[%s545 + $0x4] sm:$0x1]
        %v596 = vunpack.c.l.b16 %v587
        %v597 = vpack.c.b16 %v596, %v596
        %598 = vrot.lane.b32.xlu0 %v597, 4
        %v599 = vpop.permute.xlu0 %598
        %v602 = vunpack.c.l.b16 %v586
        %v603 = vunpack.c.l.b16 %v588
        %v604 = vpack.c.b16 %v603, %v602
        %v606 = vshrl.u32 %v604, 16
        %v608 = vshll.u32 %v604, 16
        %v610 = vrot.slane %v608, 1
        %v611 = vor.u32 %v606, %v610
        %612 = vrot.lane.b32.xlu0 %v611, 8
        %v613 = vpop.permute.xlu0 %612
        %v615 = vunpack.c.l.b16 %v589
        %v616 = vpack.c.b16 %v615, %v615
        %617 = vrot.lane.b32.xlu0 %v616, 12
        %v618 = vpop.permute.xlu0 %617
        %v620 = vunpack.c.l.b16 %v590
        %v621 = vpack.c.b16 %v620, %v620
        %622 = vrot.lane.b32.xlu0 %v621, 16
        %v623 = vpop.permute.xlu0 %622
        %v625 = vunpack.c.l.b16 %v591
        %v626 = vpack.c.b16 %v625, %v615
        %v628 = vshrl.u32 %v626, 16
        %v630 = vshll.u32 %v626, 16
        %v632 = vrot.slane %v630, 1
        %v633 = vor.u32 %v628, %v632
        %634 = vrot.lane.b32.xlu0 %v633, 20
        %v635 = vpop.permute.xlu0 %634
        %v637 = vunpack.c.l.b16 %v592
        %v638 = vpack.c.b16 %v637, %v637
        %639 = vrot.lane.b32.xlu0 %v638, 24
        %v640 = vpop.permute.xlu0 %639
        %v642 = vunpack.c.l.b16 %v593
        %v643 = vpack.c.b16 %v642, %v642
        %644 = vrot.lane.b32.xlu0 %v643, 28
        %v645 = vpop.permute.xlu0 %644
        %v647 = vunpack.c.l.b16 %v594
        %v648 = vpack.c.b16 %v647, %v637
        %v650 = vshrl.u32 %v648, 16
        %v652 = vshll.u32 %v648, 16
        %v654 = vrot.slane %v652, 1
        %v655 = vor.u32 %v650, %v654
        %656 = vrot.lane.b32.xlu0 %v655, 32
        %v657 = vpop.permute.xlu0 %656
        %vm658 = vcmask 31744
        %v661 = vsel %vm658, %v586, %v599
        %vm662 = vcmask 64512
        %v664 = vsel %vm662, %v661, %v613
        %vm665 = vcmask 97280
        %v667 = vsel %vm665, %v664, %v618
        %vm668 = vcmask 130048
        %v670 = vsel %vm668, %v667, %v623
        %vm671 = vcmask 162816
        %v673 = vsel %vm671, %v670, %v635
        %vm674 = vcmask 195584
        %v676 = vsel %vm674, %v673, %v640
        %vm677 = vcmask 228352
        %v679 = vsel %vm677, %v676, %v645
        %vm680 = vcmask 261120
        %v682 = vsel %vm680, %v679, %v657
        %v683 = vld [vmem:[%s6] sm:$0xf]
        %v684 = vld [vmem:[%s6 + $0x4] sm:$0xf]
        %v685 = vld [vmem:[%s6 + $0x8] sm:$0xf]
        %v686 = vld [vmem:[%s6 + $0xc] sm:$0xf]
        %v687 = vld [vmem:[%s6 + $0x10] sm:$0x3]
        %v693 = vunpack.c.l.b16 %v683
        %v694 = vunpack.c.l.b16 %v684
        %v695 = vunpack.c.l.b16 %v685
        %v696 = vunpack.c.l.b16 %v686
        %v697 = vunpack.c.l.b16 %v687
        %v698 = vpack.c.b16 %v694, %v693
        %v699 = vpack.c.b16 %v696, %v695
        %v700 = vpack.c.b16 %v697, %v697
        %vm703 = vcmask 293888
        %v704 = vsel %vm703, %v682, 0
        %vm706 = vcmask 1041408
        %v708 = vsel %vm706, %v700, 0
        %710 = vmatprep.subr.bf16.mxu0 0
        %711 = vmatpush1.bf16.msra.mxu0 0
        %712 = vmatprep.subr.bf16.mxu0 0
        %713 = vmatpush1.bf16.msra.mxu0 0
        %714 = vmatprep.subr.bf16.mxu0 0
        %715 = vmatpush1.bf16.msra.mxu0 0
        %716 = vmatprep.subr.bf16.mxu0 0
        %717 = vmatpush1.bf16.msra.mxu0 0
        %718 = vmatprep.subr.bf16.mxu0 0
        %719 = vmatpush1.bf16.msra.mxu0 0
        %720 = vmatprep.subr.bf16.mxu0 0
        %721 = vmatpush1.bf16.msra.mxu0 %v708
        %722 = vmatprep.subr.bf16.mxu0 0
        %723 = vmatpush1.bf16.msra.mxu0 %v699
        %724 = vmatprep.subr.bf16.mxu0 0
        %725 = vmatpush1.bf16.msra.mxu0 %v698
        %726 = vmatprep.subr.bf16.mxu0 0
        %727 = vmatpush2.bf16.msra.mxu0 0
        %728 = vmatprep.subr.bf16.mxu0 0
        %729 = vmatpush2.bf16.msra.mxu0 0
        %730 = vmatprep.subr.bf16.mxu0 0
        %731 = vmatpush2.bf16.msra.mxu0 0
        %732 = vmatprep.subr.bf16.mxu0 0
        %733 = vmatpush2.bf16.msra.mxu0 0
        %734 = vmatprep.subr.bf16.mxu0 0
        %735 = vmatpush2.bf16.msra.mxu0 0
        %736 = vmatprep.subr.bf16.mxu0 0
        %737 = vmatpush2.bf16.msra.mxu0 0
        %738 = vmatprep.subr.bf16.mxu0 0
        %739 = vmatpush2.bf16.msra.mxu0 0
        %740 = vmatprep.subr.bf16.mxu0 0
        %741 = vmatpush2.bf16.msra.mxu0 0
        %742 = vmatprep.mubr.bf16.mxu0 0
        %743 = vmatmul.mubr.bf16.gmra.mxu0 %v704
        %v744 = vpop.f32.mrf.mxu0
        %v745 = vadd.f32 0.0, %v744
        %v746 = vpop.f32.mrf.mxu0
        %v747 = vpop.f32.mrf.mxu0
        %v748 = vpop.f32.mrf.mxu0
        %749 = vdwg.mxu0
        %750 = vst [vmem:[%s503] sm:$0xff] %v745
        %v751 = vrot.slane %v745, 4
        %v752 = vadd.f32 %v745, %v751
        %v753 = vrot.slane %v752, 2
        %v754 = vadd.f32 %v752, %v753
        %v755 = vrot.slane %v754, 1
        %v756 = vadd.f32 %v754, %v755
        %757 = vst [vmem:[%s510] sm:$0x1] %v756
        %v758 = vmul.f32 %v745, %v745
        %v759 = vrot.slane %v758, 4
        %v760 = vadd.f32 %v758, %v759
        %v761 = vrot.slane %v760, 2
        %v762 = vadd.f32 %v760, %v761
        %v763 = vrot.slane %v762, 1
        %v764 = vadd.f32 %v762, %v763
        %765 = vst [vmem:[%s510 + $0x1] sm:$0x1] %v764
        %s766 = sand.u32 %s257, 1
        %s767 = scalar_lea.sflag [#allocation3], %s766
        %s768 = sand.u32 %s257, 1
        %s769 = smul.addr %s768, 8
        %s770 = scalar_lea.vmem [#allocation2], %s769
        %s771 = sand.u32 %s285, 1
        %s772 = scalar_lea.sflag [#allocation5], %s771
        %s773 = sand.u32 %s285, 1
        %s774 = smul.addr %s773, 2
        %s775 = scalar_lea.vmem [#allocation4], %s774
        // Predicated region
        $region49: #{tpu_custom_call.1} parent=47 // pred_check
          %p776 = pneg %p267
        $region50: #{tpu_custom_call.1} parent=47 // pred_check_branch
          %778 = sbr.rel (%p776) target = $region52
        $region51: #{tpu_custom_call.1} parent=47 // pred_region
          %s780 = ssub.s32 128, 128
          %781 = vsyncadd %s767, %s780
          %s782 = smul.addr %s30, 8
          %s783 = sadd.s32 %s31, %s782
          %s784 = smul.addr %s783, 128
          %s785 = scalar_lea.hbm %s7, %s784
          %s787 = sshll.u32 %s770, 4
          %s788 = int_to_ptr.vmem [resolvable:$true] %s787
          %790 = dma.vmem_to_hbm [thread:$0]  %s788, 128, %s785, %s767
        $region52: #{tpu_custom_call.1} parent=47 // pred_fallthru
          _
        // Predicated region
        $region53: #{tpu_custom_call.1} parent=47 // pred_check
          %p791 = pneg %p295
        $region54: #{tpu_custom_call.1} parent=47 // pred_check_branch
          %793 = sbr.rel (%p791) target = $region56
        $region55: #{tpu_custom_call.1} parent=47 // pred_region
          %s795 = ssub.s32 32, 32
          %796 = vsyncadd %s772, %s795
          %s797 = smul.addr %s30, 8
          %s798 = sadd.s32 %s31, %s797
          %s799 = smul.addr %s798, 32
          %s800 = scalar_lea.hbm %s8, %s799
          %s802 = sshll.u32 %s775, 4
          %s803 = int_to_ptr.vmem [resolvable:$true] %s802
          %805 = dma.vmem_to_hbm [thread:$0]  %s803, 32, %s800, %s772
        $region56: #{tpu_custom_call.1} parent=47 // pred_fallthru
          _
      $region48: #{tpu_custom_call.1} parent=5 // pred_fallthru
        _
      %p806 = scmp.le.s32.totalorder 2, %s21
      // Predicated region
      $region57: #{tpu_custom_call.1} parent=5 // pred_check
        %p807 = pneg %p806
      $region58: #{tpu_custom_call.1} parent=5 // pred_check_branch
        %809 = sbr.rel (%p807) target = $region60
      $region59: #{tpu_custom_call.1} parent=5 // pred_region
        %s810 = ssub.s32 %s21, 2
        // Predicated region
        $region61: #{tpu_custom_call.1} parent=59 // pred_check
          %p811 = pneg %p273
        $region62: #{tpu_custom_call.1} parent=59 // pred_check_branch
          %813 = sbr.rel (%p811) target = $region64
        $region63: #{tpu_custom_call.1} parent=59 // pred_region
          %s814 = sand.u32 %s258, 1
          %s815 = scalar_lea.sflag [#allocation3], %s814
          %s816 = sand.u32 %s258, 1
          %s817 = smul.addr %s816, 8
          %s818 = scalar_lea.vmem [#allocation2], %s817
          %819 = dma.done %s815, 128
        $region64: #{tpu_custom_call.1} parent=59 // pred_fallthru
          _
        // Predicated region
        $region65: #{tpu_custom_call.1} parent=59 // pred_check
          %p820 = pneg %p301
        $region66: #{tpu_custom_call.1} parent=59 // pred_check_branch
          %822 = sbr.rel (%p820) target = $region68
        $region67: #{tpu_custom_call.1} parent=59 // pred_region
          %s823 = sand.u32 %s286, 1
          %s824 = scalar_lea.sflag [#allocation5], %s823
          %s825 = sand.u32 %s286, 1
          %s826 = smul.addr %s825, 2
          %s827 = scalar_lea.vmem [#allocation4], %s826
          %828 = dma.done %s824, 32
        $region68: #{tpu_custom_call.1} parent=59 // pred_fallthru
          _
      $region60: #{tpu_custom_call.1} parent=5 // pred_fallthru
        _
    $region6: #{tpu_custom_call.1} parent=1 // loop_footer
      %s25 = sadd.s32 1, %s21
    $region7: #{tpu_custom_call.1} parent=1 // loop_footer_branch
      %20 = sbr.rel target = $region3
    $region8: #{tpu_custom_call.1} parent=1 // loop_exit
      _
    %829 = vsyncpa [#allocation3], 1
    %s830 = scalar_lea.sflag [#allocation3], 1
    %831 = vsyncpa %s830, 1
    %832 = vsyncpa [#allocation5], 1
    %s833 = scalar_lea.sflag [#allocation5], 1
    %834 = vsyncpa %s833, 1

</llo_original>
